<compile_context>
chip_gen: v7x
topology: tpu7x:2x2x1
jax: 0.10.0
libtpu: 0.0.40
codegen_flags: <defaults>
</compile_context>

<pallas_src>
import jax
import jax.numpy as jnp
import numpy as np
from jax.experimental import pallas as pl
from jax.experimental.pallas import tpu as pltpu

K = 7
PAD = K // 2
C1 = 0.01 ** 2
C2 = 0.03 ** 2


def ssim_kernel(xp_ref, yp_ref, out_ref):
    # xp_ref / yp_ref block: (1, Hp, Wp) reflection-padded plane (H on
    # sublanes, W on lanes).  out_ref block: (1, H, W).
    xp = xp_ref[0].astype(jnp.float32)          # (Hp, Wp)
    yp = yp_ref[0].astype(jnp.float32)
    Hp, Wp = xp.shape
    H = Hp - (K - 1)
    W = Wp - (K - 1)

    def box7(q):
        # Exact separable 7x7 "valid" box SUM (not mean) via pair-reuse tree.
        # Pass 1: rows (sublane shifts) on the full padded plane.
        la = H + 4
        a = q[0:la] + q[1:1 + la]                                # (H+4, Wp)
        r = a[0:H] + a[2:2 + H] + a[4:4 + H] + q[6:6 + H]        # (H,   Wp)
        # Pass 2: columns (lane shifts -> XLU) on the reduced intermediate.
        lb = W + 4
        b = r[:, 0:lb] + r[:, 1:1 + lb]                          # (H, W+4)
        s = b[:, 0:W] + b[:, 2:2 + W] + b[:, 4:4 + W] + r[:, 6:6 + W]
        return s                                                  # (H, W)

    sx = box7(xp)
    sy = box7(yp)
    sxx = box7(xp * xp)
    syy = box7(yp * yp)
    sxy = box7(xp * yp)

    # Work on 49x-scaled sums; C1/C2 scaled by 49^2 keep the ratio identical.
    A = float(K * K)
    c1s = C1 * A * A
    c2s = C2 * A * A
    pxy = sx * sy
    p2 = sx * sx + sy * sy
    num = (2.0 * pxy + c1s) * (2.0 * (A * sxy - pxy) + c2s)
    den = (p2 + c1s) * (A * (sxx + syy) - p2 + c2s)

    # EUP reciprocal + one Newton step (full f32 accuracy, divide off VALU).
    inv = pl.reciprocal(den, approx=True)
    inv = inv * (2.0 - den * inv)

    res = jnp.clip((1.0 - num * inv) * 0.5, 0.0, 1.0)
    out_ref[0] = res.astype(out_ref.dtype)


def ssim_pallas(x, y):
    B, C, H, W = x.shape
    N = B * C
    Hp, Wp = H + 2 * PAD, W + 2 * PAD

    # ReflectionPad2d(3) == jnp 'reflect' (no edge duplication).  No dtype
    # upcast and no transpose: planes stay (N, H, W) with W on lanes.
    pad_cfg = ((0, 0), (PAD, PAD), (PAD, PAD))
    xp = jnp.pad(x.reshape(N, H, W), pad_cfg, mode="reflect")
    yp = jnp.pad(y.reshape(N, H, W), pad_cfg, mode="reflect")

    out = pl.pallas_call(
        ssim_kernel,
        out_shape=jax.ShapeDtypeStruct((N, H, W), jnp.float32),
        grid=(N,),
        in_specs=[
            pl.BlockSpec((1, Hp, Wp), lambda i: (i, 0, 0)),
            pl.BlockSpec((1, Hp, Wp), lambda i: (i, 0, 0)),
        ],
        out_specs=pl.BlockSpec((1, H, W), lambda i: (i, 0, 0)),
        compiler_params=pltpu.CompilerParams(
            dimension_semantics=("parallel",),
            vmem_limit_bytes=32 * 1024 * 1024,
        ),
    )(xp, yp)

    # NCHW restore is a pure reshape (no transpose / extra copy pass).
    return out.reshape(B, C, H, W)


def ssim_ref(x, y):
    # Pure-JAX reference (matches the PyTorch SSIM module).
    x = x.astype(jnp.float32)
    y = y.astype(jnp.float32)
    pad_cfg = ((0, 0), (0, 0), (PAD, PAD), (PAD, PAD))
    xp = jnp.pad(x, pad_cfg, mode="reflect")
    yp = jnp.pad(y, pad_cfg, mode="reflect")

    def avg_pool(q):
        s = jax.lax.reduce_window(q, 0.0, jax.lax.add, (1, 1, K, K),
                                  (1, 1, 1, 1), "VALID")
        return s / (K * K)

    mu_x = avg_pool(xp)
    mu_y = avg_pool(yp)
    sigma_x = avg_pool(xp * xp) - mu_x * mu_x
    sigma_y = avg_pool(yp * yp) - mu_y * mu_y
    sigma_xy = avg_pool(xp * yp) - mu_x * mu_y
    ssim_n = (2.0 * mu_x * mu_y + C1) * (2.0 * sigma_xy + C2)
    ssim_d = (mu_x * mu_x + mu_y * mu_y + C1) * (sigma_x + sigma_y + C2)
    return jnp.clip((1.0 - ssim_n / ssim_d) * 0.5, 0.0, 1.0)


if __name__ == "__main__":
    key = jax.random.PRNGKey(0)
    kx, ky = jax.random.split(key)
    B, C, H, W = 2, 4, 16, 16
    x = jax.random.uniform(kx, (B, C, H, W), dtype=jnp.float32)
    y = jax.random.uniform(ky, (B, C, H, W), dtype=jnp.float32)

    out = jax.block_until_ready(ssim_pallas(x, y))
    ref = jax.block_until_ready(ssim_ref(x, y))

    assert out.shape == (B, C, H, W)
    np.testing.assert_allclose(np.asarray(out), np.asarray(ref),
                               rtol=1e-5, atol=1e-5)
    print("KERNEL_OK")
</pallas_src>

<mosaic_0001>
module attributes {stable_mosaic.version = 11 : i64} {
  func.func @ssim_kernel(%arg0: i32, %arg1: memref<1x22x22xf32, #tpu.memory_space<vmem>>, %arg2: memref<1x22x22xf32, #tpu.memory_space<vmem>>, %arg3: memref<1x16x16xf32, #tpu.memory_space<vmem>>) attributes {dimension_semantics = [#tpu.dimension_semantics<parallel>], iteration_bounds = array<i64: 8>, scalar_prefetch = 0 : i64, scratch_operands = 0 : i64, tpu.core_type = #tpu.core_type<tc>, window_params = [{transform_indices = @transform_0, window_bounds = array<i64: 1, 22, 22>}, {transform_indices = @transform_1, window_bounds = array<i64: 1, 22, 22>}, {transform_indices = @transform_2, window_bounds = array<i64: 1, 16, 16>}]} {
    %c0 = arith.constant 0 : index
    %c0_0 = arith.constant 0 : index
    %c0_1 = arith.constant 0 : index
    %0 = vector.load %arg1[%c0, %c0_0, %c0_1] : memref<1x22x22xf32, #tpu.memory_space<vmem>>, vector<1x22x22xf32>
    %1 = vector.shape_cast %0 : vector<1x22x22xf32> to vector<22x22xf32>
    %c0_2 = arith.constant 0 : index
    %c0_3 = arith.constant 0 : index
    %c0_4 = arith.constant 0 : index
    %2 = vector.load %arg2[%c0_2, %c0_3, %c0_4] : memref<1x22x22xf32, #tpu.memory_space<vmem>>, vector<1x22x22xf32>
    %3 = vector.shape_cast %2 : vector<1x22x22xf32> to vector<22x22xf32>
    %4 = vector.extract_strided_slice %1 {offsets = [0, 0], sizes = [20, 22], strides = [1, 1]} : vector<22x22xf32> to vector<20x22xf32>
    %5 = vector.extract_strided_slice %1 {offsets = [1, 0], sizes = [20, 22], strides = [1, 1]} : vector<22x22xf32> to vector<20x22xf32>
    %6 = arith.addf %4, %5 : vector<20x22xf32>
    %7 = vector.extract_strided_slice %6 {offsets = [0, 0], sizes = [16, 22], strides = [1, 1]} : vector<20x22xf32> to vector<16x22xf32>
    %8 = vector.extract_strided_slice %6 {offsets = [2, 0], sizes = [16, 22], strides = [1, 1]} : vector<20x22xf32> to vector<16x22xf32>
    %9 = arith.addf %7, %8 : vector<16x22xf32>
    %10 = vector.extract_strided_slice %6 {offsets = [4, 0], sizes = [16, 22], strides = [1, 1]} : vector<20x22xf32> to vector<16x22xf32>
    %11 = arith.addf %9, %10 : vector<16x22xf32>
    %12 = vector.extract_strided_slice %1 {offsets = [6, 0], sizes = [16, 22], strides = [1, 1]} : vector<22x22xf32> to vector<16x22xf32>
    %13 = arith.addf %11, %12 : vector<16x22xf32>
    %14 = vector.extract_strided_slice %13 {offsets = [0, 0], sizes = [16, 20], strides = [1, 1]} : vector<16x22xf32> to vector<16x20xf32>
    %15 = vector.extract_strided_slice %13 {offsets = [0, 1], sizes = [16, 20], strides = [1, 1]} : vector<16x22xf32> to vector<16x20xf32>
    %16 = arith.addf %14, %15 : vector<16x20xf32>
    %17 = vector.extract_strided_slice %16 {offsets = [0, 0], sizes = [16, 16], strides = [1, 1]} : vector<16x20xf32> to vector<16x16xf32>
    %18 = vector.extract_strided_slice %16 {offsets = [0, 2], sizes = [16, 16], strides = [1, 1]} : vector<16x20xf32> to vector<16x16xf32>
    %19 = arith.addf %17, %18 : vector<16x16xf32>
    %20 = vector.extract_strided_slice %16 {offsets = [0, 4], sizes = [16, 16], strides = [1, 1]} : vector<16x20xf32> to vector<16x16xf32>
    %21 = arith.addf %19, %20 : vector<16x16xf32>
    %22 = vector.extract_strided_slice %13 {offsets = [0, 6], sizes = [16, 16], strides = [1, 1]} : vector<16x22xf32> to vector<16x16xf32>
    %23 = arith.addf %21, %22 : vector<16x16xf32>
    %24 = vector.extract_strided_slice %3 {offsets = [0, 0], sizes = [20, 22], strides = [1, 1]} : vector<22x22xf32> to vector<20x22xf32>
    %25 = vector.extract_strided_slice %3 {offsets = [1, 0], sizes = [20, 22], strides = [1, 1]} : vector<22x22xf32> to vector<20x22xf32>
    %26 = arith.addf %24, %25 : vector<20x22xf32>
    %27 = vector.extract_strided_slice %26 {offsets = [0, 0], sizes = [16, 22], strides = [1, 1]} : vector<20x22xf32> to vector<16x22xf32>
    %28 = vector.extract_strided_slice %26 {offsets = [2, 0], sizes = [16, 22], strides = [1, 1]} : vector<20x22xf32> to vector<16x22xf32>
    %29 = arith.addf %27, %28 : vector<16x22xf32>
    %30 = vector.extract_strided_slice %26 {offsets = [4, 0], sizes = [16, 22], strides = [1, 1]} : vector<20x22xf32> to vector<16x22xf32>
    %31 = arith.addf %29, %30 : vector<16x22xf32>
    %32 = vector.extract_strided_slice %3 {offsets = [6, 0], sizes = [16, 22], strides = [1, 1]} : vector<22x22xf32> to vector<16x22xf32>
    %33 = arith.addf %31, %32 : vector<16x22xf32>
    %34 = vector.extract_strided_slice %33 {offsets = [0, 0], sizes = [16, 20], strides = [1, 1]} : vector<16x22xf32> to vector<16x20xf32>
    %35 = vector.extract_strided_slice %33 {offsets = [0, 1], sizes = [16, 20], strides = [1, 1]} : vector<16x22xf32> to vector<16x20xf32>
    %36 = arith.addf %34, %35 : vector<16x20xf32>
    %37 = vector.extract_strided_slice %36 {offsets = [0, 0], sizes = [16, 16], strides = [1, 1]} : vector<16x20xf32> to vector<16x16xf32>
    %38 = vector.extract_strided_slice %36 {offsets = [0, 2], sizes = [16, 16], strides = [1, 1]} : vector<16x20xf32> to vector<16x16xf32>
    %39 = arith.addf %37, %38 : vector<16x16xf32>
    %40 = vector.extract_strided_slice %36 {offsets = [0, 4], sizes = [16, 16], strides = [1, 1]} : vector<16x20xf32> to vector<16x16xf32>
    %41 = arith.addf %39, %40 : vector<16x16xf32>
    %42 = vector.extract_strided_slice %33 {offsets = [0, 6], sizes = [16, 16], strides = [1, 1]} : vector<16x22xf32> to vector<16x16xf32>
    %43 = arith.addf %41, %42 : vector<16x16xf32>
    %44 = arith.mulf %1, %1 : vector<22x22xf32>
    %45 = vector.extract_strided_slice %44 {offsets = [0, 0], sizes = [20, 22], strides = [1, 1]} : vector<22x22xf32> to vector<20x22xf32>
    %46 = vector.extract_strided_slice %44 {offsets = [1, 0], sizes = [20, 22], strides = [1, 1]} : vector<22x22xf32> to vector<20x22xf32>
    %47 = arith.addf %45, %46 : vector<20x22xf32>
    %48 = vector.extract_strided_slice %47 {offsets = [0, 0], sizes = [16, 22], strides = [1, 1]} : vector<20x22xf32> to vector<16x22xf32>
    %49 = vector.extract_strided_slice %47 {offsets = [2, 0], sizes = [16, 22], strides = [1, 1]} : vector<20x22xf32> to vector<16x22xf32>
    %50 = arith.addf %48, %49 : vector<16x22xf32>
    %51 = vector.extract_strided_slice %47 {offsets = [4, 0], sizes = [16, 22], strides = [1, 1]} : vector<20x22xf32> to vector<16x22xf32>
    %52 = arith.addf %50, %51 : vector<16x22xf32>
    %53 = vector.extract_strided_slice %44 {offsets = [6, 0], sizes = [16, 22], strides = [1, 1]} : vector<22x22xf32> to vector<16x22xf32>
    %54 = arith.addf %52, %53 : vector<16x22xf32>
    %55 = vector.extract_strided_slice %54 {offsets = [0, 0], sizes = [16, 20], strides = [1, 1]} : vector<16x22xf32> to vector<16x20xf32>
    %56 = vector.extract_strided_slice %54 {offsets = [0, 1], sizes = [16, 20], strides = [1, 1]} : vector<16x22xf32> to vector<16x20xf32>
    %57 = arith.addf %55, %56 : vector<16x20xf32>
    %58 = vector.extract_strided_slice %57 {offsets = [0, 0], sizes = [16, 16], strides = [1, 1]} : vector<16x20xf32> to vector<16x16xf32>
    %59 = vector.extract_strided_slice %57 {offsets = [0, 2], sizes = [16, 16], strides = [1, 1]} : vector<16x20xf32> to vector<16x16xf32>
    %60 = arith.addf %58, %59 : vector<16x16xf32>
    %61 = vector.extract_strided_slice %57 {offsets = [0, 4], sizes = [16, 16], strides = [1, 1]} : vector<16x20xf32> to vector<16x16xf32>
    %62 = arith.addf %60, %61 : vector<16x16xf32>
    %63 = vector.extract_strided_slice %54 {offsets = [0, 6], sizes = [16, 16], strides = [1, 1]} : vector<16x22xf32> to vector<16x16xf32>
    %64 = arith.addf %62, %63 : vector<16x16xf32>
    %65 = arith.mulf %3, %3 : vector<22x22xf32>
    %66 = vector.extract_strided_slice %65 {offsets = [0, 0], sizes = [20, 22], strides = [1, 1]} : vector<22x22xf32> to vector<20x22xf32>
    %67 = vector.extract_strided_slice %65 {offsets = [1, 0], sizes = [20, 22], strides = [1, 1]} : vector<22x22xf32> to vector<20x22xf32>
    %68 = arith.addf %66, %67 : vector<20x22xf32>
    %69 = vector.extract_strided_slice %68 {offsets = [0, 0], sizes = [16, 22], strides = [1, 1]} : vector<20x22xf32> to vector<16x22xf32>
    %70 = vector.extract_strided_slice %68 {offsets = [2, 0], sizes = [16, 22], strides = [1, 1]} : vector<20x22xf32> to vector<16x22xf32>
    %71 = arith.addf %69, %70 : vector<16x22xf32>
    %72 = vector.extract_strided_slice %68 {offsets = [4, 0], sizes = [16, 22], strides = [1, 1]} : vector<20x22xf32> to vector<16x22xf32>
    %73 = arith.addf %71, %72 : vector<16x22xf32>
    %74 = vector.extract_strided_slice %65 {offsets = [6, 0], sizes = [16, 22], strides = [1, 1]} : vector<22x22xf32> to vector<16x22xf32>
    %75 = arith.addf %73, %74 : vector<16x22xf32>
    %76 = vector.extract_strided_slice %75 {offsets = [0, 0], sizes = [16, 20], strides = [1, 1]} : vector<16x22xf32> to vector<16x20xf32>
    %77 = vector.extract_strided_slice %75 {offsets = [0, 1], sizes = [16, 20], strides = [1, 1]} : vector<16x22xf32> to vector<16x20xf32>
    %78 = arith.addf %76, %77 : vector<16x20xf32>
    %79 = vector.extract_strided_slice %78 {offsets = [0, 0], sizes = [16, 16], strides = [1, 1]} : vector<16x20xf32> to vector<16x16xf32>
    %80 = vector.extract_strided_slice %78 {offsets = [0, 2], sizes = [16, 16], strides = [1, 1]} : vector<16x20xf32> to vector<16x16xf32>
    %81 = arith.addf %79, %80 : vector<16x16xf32>
    %82 = vector.extract_strided_slice %78 {offsets = [0, 4], sizes = [16, 16], strides = [1, 1]} : vector<16x20xf32> to vector<16x16xf32>
    %83 = arith.addf %81, %82 : vector<16x16xf32>
    %84 = vector.extract_strided_slice %75 {offsets = [0, 6], sizes = [16, 16], strides = [1, 1]} : vector<16x22xf32> to vector<16x16xf32>
    %85 = arith.addf %83, %84 : vector<16x16xf32>
    %86 = arith.mulf %1, %3 : vector<22x22xf32>
    %87 = vector.extract_strided_slice %86 {offsets = [0, 0], sizes = [20, 22], strides = [1, 1]} : vector<22x22xf32> to vector<20x22xf32>
    %88 = vector.extract_strided_slice %86 {offsets = [1, 0], sizes = [20, 22], strides = [1, 1]} : vector<22x22xf32> to vector<20x22xf32>
    %89 = arith.addf %87, %88 : vector<20x22xf32>
    %90 = vector.extract_strided_slice %89 {offsets = [0, 0], sizes = [16, 22], strides = [1, 1]} : vector<20x22xf32> to vector<16x22xf32>
    %91 = vector.extract_strided_slice %89 {offsets = [2, 0], sizes = [16, 22], strides = [1, 1]} : vector<20x22xf32> to vector<16x22xf32>
    %92 = arith.addf %90, %91 : vector<16x22xf32>
    %93 = vector.extract_strided_slice %89 {offsets = [4, 0], sizes = [16, 22], strides = [1, 1]} : vector<20x22xf32> to vector<16x22xf32>
    %94 = arith.addf %92, %93 : vector<16x22xf32>
    %95 = vector.extract_strided_slice %86 {offsets = [6, 0], sizes = [16, 22], strides = [1, 1]} : vector<22x22xf32> to vector<16x22xf32>
    %96 = arith.addf %94, %95 : vector<16x22xf32>
    %97 = vector.extract_strided_slice %96 {offsets = [0, 0], sizes = [16, 20], strides = [1, 1]} : vector<16x22xf32> to vector<16x20xf32>
    %98 = vector.extract_strided_slice %96 {offsets = [0, 1], sizes = [16, 20], strides = [1, 1]} : vector<16x22xf32> to vector<16x20xf32>
    %99 = arith.addf %97, %98 : vector<16x20xf32>
    %100 = vector.extract_strided_slice %99 {offsets = [0, 0], sizes = [16, 16], strides = [1, 1]} : vector<16x20xf32> to vector<16x16xf32>
    %101 = vector.extract_strided_slice %99 {offsets = [0, 2], sizes = [16, 16], strides = [1, 1]} : vector<16x20xf32> to vector<16x16xf32>
    %102 = arith.addf %100, %101 : vector<16x16xf32>
    %103 = vector.extract_strided_slice %99 {offsets = [0, 4], sizes = [16, 16], strides = [1, 1]} : vector<16x20xf32> to vector<16x16xf32>
    %104 = arith.addf %102, %103 : vector<16x16xf32>
    %105 = vector.extract_strided_slice %96 {offsets = [0, 6], sizes = [16, 16], strides = [1, 1]} : vector<16x22xf32> to vector<16x16xf32>
    %106 = arith.addf %104, %105 : vector<16x16xf32>
    %107 = arith.mulf %23, %43 : vector<16x16xf32>
    %108 = arith.mulf %23, %23 : vector<16x16xf32>
    %109 = arith.mulf %43, %43 : vector<16x16xf32>
    %110 = arith.addf %108, %109 : vector<16x16xf32>
    %cst = arith.constant 2.000000e+00 : f32
    %111 = vector.broadcast %cst : f32 to vector<16x16xf32>
    %112 = arith.mulf %111, %107 : vector<16x16xf32>
    %cst_5 = arith.constant 2.401000e-01 : f32
    %113 = vector.broadcast %cst_5 : f32 to vector<16x16xf32>
    %114 = arith.addf %112, %113 : vector<16x16xf32>
    %cst_6 = arith.constant 4.900000e+01 : f32
    %115 = vector.broadcast %cst_6 : f32 to vector<16x16xf32>
    %116 = arith.mulf %115, %106 : vector<16x16xf32>
    %117 = arith.subf %116, %107 : vector<16x16xf32>
    %cst_7 = arith.constant 2.000000e+00 : f32
    %118 = vector.broadcast %cst_7 : f32 to vector<16x16xf32>
    %119 = arith.mulf %118, %117 : vector<16x16xf32>
    %cst_8 = arith.constant 2.160900e+00 : f32
    %120 = vector.broadcast %cst_8 : f32 to vector<16x16xf32>
    %121 = arith.addf %119, %120 : vector<16x16xf32>
    %122 = arith.mulf %114, %121 : vector<16x16xf32>
    %cst_9 = arith.constant 2.401000e-01 : f32
    %123 = vector.broadcast %cst_9 : f32 to vector<16x16xf32>
    %124 = arith.addf %110, %123 : vector<16x16xf32>
    %125 = arith.addf %64, %85 : vector<16x16xf32>
    %cst_10 = arith.constant 4.900000e+01 : f32
    %126 = vector.broadcast %cst_10 : f32 to vector<16x16xf32>
    %127 = arith.mulf %126, %125 : vector<16x16xf32>
    %128 = arith.subf %127, %110 : vector<16x16xf32>
    %cst_11 = arith.constant 2.160900e+00 : f32
    %129 = vector.broadcast %cst_11 : f32 to vector<16x16xf32>
    %130 = arith.addf %128, %129 : vector<16x16xf32>
    %131 = arith.mulf %124, %130 : vector<16x16xf32>
    %132 = tpu.reciprocal %131 {approx = true} : vector<16x16xf32> -> vector<16x16xf32>
    %133 = arith.mulf %131, %132 : vector<16x16xf32>
    %cst_12 = arith.constant 2.000000e+00 : f32
    %134 = vector.broadcast %cst_12 : f32 to vector<16x16xf32>
    %135 = arith.subf %134, %133 : vector<16x16xf32>
    %136 = arith.mulf %132, %135 : vector<16x16xf32>
    %137 = arith.mulf %122, %136 : vector<16x16xf32>
    %cst_13 = arith.constant 1.000000e+00 : f32
    %138 = vector.broadcast %cst_13 : f32 to vector<16x16xf32>
    %139 = arith.subf %138, %137 : vector<16x16xf32>
    %cst_14 = arith.constant 5.000000e-01 : f32
    %140 = vector.broadcast %cst_14 : f32 to vector<16x16xf32>
    %141 = arith.mulf %139, %140 : vector<16x16xf32>
    %cst_15 = arith.constant 0.000000e+00 : f32
    %cst_16 = arith.constant 1.000000e+00 : f32
    %142 = vector.broadcast %cst_15 : f32 to vector<16x16xf32>
    %143 = arith.maximumf %142, %141 : vector<16x16xf32>
    %144 = vector.broadcast %cst_16 : f32 to vector<16x16xf32>
    %145 = arith.minimumf %144, %143 : vector<16x16xf32>
    %c0_17 = arith.constant 0 : index
    %c0_18 = arith.constant 0 : index
    %c0_19 = arith.constant 0 : index
    %146 = vector.load %arg3[%c0_17, %c0_18, %c0_19] : memref<1x16x16xf32, #tpu.memory_space<vmem>>, vector<1x16x16xf32>
    %147 = vector.shape_cast %146 : vector<1x16x16xf32> to vector<16x16xf32>
    %148 = vector.shape_cast %145 : vector<16x16xf32> to vector<1x16x16xf32>
    tpu.vector_store %arg3[%c0_17, %c0_18, %c0_19], %148 {strides = array<i32>} : memref<1x16x16xf32, #tpu.memory_space<vmem>>, vector<1x16x16xf32>,
    return
  }
  func.func @transform_0(%arg0: i32) -> (i32, i32, i32) {
    %c0_i32 = arith.constant 0 : i32
    %c0_i32_0 = arith.constant 0 : i32
    %c0_i32_1 = arith.constant 0 : i32
    return %arg0, %c0_i32, %c0_i32_0 : i32, i32, i32
  }
  func.func @transform_1(%arg0: i32) -> (i32, i32, i32) {
    %c0_i32 = arith.constant 0 : i32
    %c0_i32_0 = arith.constant 0 : i32
    %c0_i32_1 = arith.constant 0 : i32
    return %arg0, %c0_i32, %c0_i32_0 : i32, i32, i32
  }
  func.func @transform_2(%arg0: i32) -> (i32, i32, i32) {
    %c0_i32 = arith.constant 0 : i32
    %c0_i32_0 = arith.constant 0 : i32
    %c0_i32_1 = arith.constant 0 : i32
    return %arg0, %c0_i32, %c0_i32_0 : i32, i32, i32
  }
}

</mosaic_0001>

<llo_original>
// kernel: tpu_custom_call.1
$region0: #{tpu_custom_call.1}
  #allocation0 [shape = 'u32[]', space=smem, size = 0x4, offset = 0x4, fixed_abs, tag = 'smem constant byte address 0x4 - core index']
  #allocation1 [shape = 'u32[144,128]{1,0:T(1,128)}', space=vmem, size = 0x12000, scoped, tag = 'internal scratch']
  %s0 = inlined_call_operand.vmem [shape: f32[8,22,22], index: 0, kind: input, shape index: {}]
  %s1 = inlined_call_operand.vmem [shape: f32[8,22,22], index: 1, kind: input, shape index: {}]
  %s2 = inlined_call_operand.hbm [shape: f32[8,16,16], index: 2, kind: output, shape index: {}]
  %s3 = sld [smem:[#allocation0]]
  $region41: #{tpu_custom_call.1} parent=0
    _
  %s5 = ssub.s32 1, %s3
  %s6 = scalar_select 0, %s5, %s3
  $region1: #{tpu_custom_call.1} parent=0
    #allocation2 [shape = 'u8[16384]{0}', space=vmem, size = 0x4000, scoped, tag = 'output window, operand 0']
    #allocation3 [shape = 's32[2]{0}', space=sflag, size = 0x8, scoped, tag = 'scoped memory for tpu_custom_call.1']
    %7 = vsyncpa [#allocation3], 0
    %s8 = scalar_lea.sflag [#allocation3], 1
    %9 = vsyncpa %s8, 0
    loop: start=0, step=1, limit=10
    $region2: #{tpu_custom_call.1} parent=1 // loop_pre_header
      _
    $region3: #{tpu_custom_call.1} parent=1 // loop_header
      %s11 = sphi 0, %s15
      %p12 = scmp.ge.s32.totalorder %s11, 10
      %s21 = sphi 0, %s23
      %s24 = sphi 0, %s21
      %s25 = sphi 0, %s24
      %s41 = sphi 0, %s25
      %s47 = sphi 0, %s49
      %s50 = sphi 0, %s47
      %s51 = sphi 0, %s50
      %s67 = sphi 0, %s51
      %s73 = sphi 0, %s75
      %s76 = sphi 0, %s73
      %s77 = sphi 0, %s76
      %s93 = sphi 0, %s77
    $region4: #{tpu_custom_call.1} parent=1 // loop_header_branch
      %14 = sbr.rel (%p12) target = $region8
    $region5: #{tpu_custom_call.1} parent=1 // loop_body
      %s16 = ssub.s32 %s11, 1
      %s17 = ssub.s32 %s11, 2
      %s18 = sadd.s32 %s11, 1
      %s19 = ssub.s32 %s11, %s18
      %p20 = scmp.eq.s32.totalorder %s19, 0
      %s22 = sadd.s32 %s21, 1
      %s23 = scalar_select %p20, %s21, %s22
      %p26 = pneg %p20
      %p27 = scmp.eq.s32.totalorder %s11, 7
      %p28 = por %p26, %p27
      %p29 = scmp.ne.s32.totalorder %s21, %s24
      %p30 = scmp.eq.s32.totalorder %s11, 0
      %p31 = por %p29, %p30
      %p32 = scmp.ne.s32.totalorder %s21, %s24
      %p33 = scmp.eq.s32.totalorder %s16, 7
      %p34 = por %p32, %p33
      %p35 = scmp.ne.s32.totalorder %s24, %s25
      %p36 = scmp.eq.s32.totalorder %s16, 0
      %p37 = por %p35, %p36
      %p38 = scmp.ne.s32.totalorder %s24, %s25
      %p39 = scmp.eq.s32.totalorder %s17, 7
      %p40 = por %p38, %p39
      %p42 = scmp.ne.s32.totalorder %s25, %s41
      %p43 = scmp.eq.s32.totalorder %s17, 0
      %p44 = por %p42, %p43
      %s45 = ssub.s32 %s11, %s18
      %p46 = scmp.eq.s32.totalorder %s45, 0
      %s48 = sadd.s32 %s47, 1
      %s49 = scalar_select %p46, %s47, %s48
      %p52 = pneg %p46
      %p53 = scmp.eq.s32.totalorder %s11, 7
      %p54 = por %p52, %p53
      %p55 = scmp.ne.s32.totalorder %s47, %s50
      %p56 = scmp.eq.s32.totalorder %s11, 0
      %p57 = por %p55, %p56
      %p58 = scmp.ne.s32.totalorder %s47, %s50
      %p59 = scmp.eq.s32.totalorder %s16, 7
      %p60 = por %p58, %p59
      %p61 = scmp.ne.s32.totalorder %s50, %s51
      %p62 = scmp.eq.s32.totalorder %s16, 0
      %p63 = por %p61, %p62
      %p64 = scmp.ne.s32.totalorder %s50, %s51
      %p65 = scmp.eq.s32.totalorder %s17, 7
      %p66 = por %p64, %p65
      %p68 = scmp.ne.s32.totalorder %s51, %s67
      %p69 = scmp.eq.s32.totalorder %s17, 0
      %p70 = por %p68, %p69
      %s71 = ssub.s32 %s11, %s18
      %p72 = scmp.eq.s32.totalorder %s71, 0
      %s74 = sadd.s32 %s73, 1
      %s75 = scalar_select %p72, %s73, %s74
      %p78 = pneg %p72
      %p79 = scmp.eq.s32.totalorder %s11, 7
      %p80 = por %p78, %p79
      %p81 = scmp.ne.s32.totalorder %s73, %s76
      %p82 = scmp.eq.s32.totalorder %s11, 0
      %p83 = por %p81, %p82
      %p84 = scmp.ne.s32.totalorder %s73, %s76
      %p85 = scmp.eq.s32.totalorder %s16, 7
      %p86 = por %p84, %p85
      %p87 = scmp.ne.s32.totalorder %s76, %s77
      %p88 = scmp.eq.s32.totalorder %s16, 0
      %p89 = por %p87, %p88
      %p90 = scmp.ne.s32.totalorder %s76, %s77
      %p91 = scmp.eq.s32.totalorder %s17, 7
      %p92 = por %p90, %p91
      %p94 = scmp.ne.s32.totalorder %s77, %s93
      %p95 = scmp.eq.s32.totalorder %s17, 0
      %p96 = por %p94, %p95
      %p97 = scmp.le.s32.totalorder 1, %s11
      %p98 = scmp.lt.s32.totalorder %s11, 9
      %p99 = pnand %p97, %p98
      %p100 = pneg %p99
      // Predicated region
      $region9: #{tpu_custom_call.1} parent=5 // pred_check
        _
      $region10: #{tpu_custom_call.1} parent=5 // pred_check_branch
        %102 = sbr.rel (%p99) target = $region12
      $region11: #{tpu_custom_call.1} parent=5 // pred_region
        %s103 = ssub.s32 %s11, 1
      $region12: #{tpu_custom_call.1} parent=5 // pred_fallthru
        _
      %p104 = scmp.lt.s32.totalorder %s11, 8
      // Predicated region
      $region13: #{tpu_custom_call.1} parent=5 // pred_check
        %p105 = pneg %p104
      $region14: #{tpu_custom_call.1} parent=5 // pred_check_branch
        %107 = sbr.rel (%p105) target = $region16
      $region15: #{tpu_custom_call.1} parent=5 // pred_region
        // Predicated region
        $region17: #{tpu_custom_call.1} parent=15 // pred_check
          %p108 = pneg %p31
        $region18: #{tpu_custom_call.1} parent=15 // pred_check_branch
          %110 = sbr.rel (%p108) target = $region20
        $region19: #{tpu_custom_call.1} parent=15 // pred_region
          %p111 = scmp.lt.s32.totalorder %s11, 7
          %s112 = scalar_select %p111, %s11, 7
          %s113 = smul.addr %s112, 3
          %s114 = smul.addr %s113, 8
          %s115 = scalar_lea.vmem %s0, %s114
        $region20: #{tpu_custom_call.1} parent=15 // pred_fallthru
          _
        // Predicated region
        $region21: #{tpu_custom_call.1} parent=15 // pred_check
          %p116 = pneg %p57
        $region22: #{tpu_custom_call.1} parent=15 // pred_check_branch
          %118 = sbr.rel (%p116) target = $region24
        $region23: #{tpu_custom_call.1} parent=15 // pred_region
          %p119 = scmp.lt.s32.totalorder %s11, 7
          %s120 = scalar_select %p119, %s11, 7
          %s121 = smul.addr %s120, 3
          %s122 = smul.addr %s121, 8
          %s123 = scalar_lea.vmem %s1, %s122
        $region24: #{tpu_custom_call.1} parent=15 // pred_fallthru
          _
      $region16: #{tpu_custom_call.1} parent=5 // pred_fallthru
        _
      %p124 = scmp.le.s32.totalorder 1, %s11
      %p125 = scmp.lt.s32.totalorder %s11, 9
      %p126 = pnand %p124, %p125
      %p127 = pneg %p126
      // Predicated region
      $region25: #{tpu_custom_call.1} parent=5 // pred_check
        _
      $region26: #{tpu_custom_call.1} parent=5 // pred_check_branch
        %129 = sbr.rel (%p126) target = $region28
      $region27: #{tpu_custom_call.1} parent=5 // pred_region
        %s130 = ssub.s32 %s11, 1
        %p131 = scmp.lt.s32.totalorder %s16, 7
        %s132 = scalar_select %p131, %s16, 7
        %s133 = smul.addr %s132, 3
        %s134 = smul.addr %s133, 8
        %s135 = scalar_lea.vmem %s0, %s134
        %p136 = pneg %p37
        %p137 = pneg %p34
        %p138 = scmp.lt.s32.totalorder %s16, 7
        %s139 = scalar_select %p138, %s16, 7
        %s140 = smul.addr %s139, 3
        %s141 = smul.addr %s140, 8
        %s142 = scalar_lea.vmem %s1, %s141
        %p143 = pneg %p63
        %p144 = pneg %p60
        %p145 = pneg %p89
        %p146 = pneg %p86
        %s147 = sand.u32 %s76, 1
        %s148 = scalar_lea.sflag [#allocation3], %s147
        %s149 = sand.u32 %s76, 1
        %s150 = smul.addr %s149, 16
        %s151 = scalar_lea.vmem [#allocation2], %s150
        %p152 = scmp.lt.s32.totalorder %s16, 7
        %s153 = scalar_select %p152, %s16, 7
        %s154 = smul.addr %s153, 3
        %s155 = smul.addr %s154, 8
        %s156 = scalar_lea.vmem %s0, %s155
        %p157 = scmp.lt.s32.totalorder %s16, 7
        %s158 = scalar_select %p157, %s16, 7
        %s159 = smul.addr %s158, 3
        %s160 = smul.addr %s159, 8
        %s161 = scalar_lea.vmem %s1, %s160
        %v162 = vld [vmem:[%s156] sm:$0xff]
        %v163 = vld [vmem:[%s156 + $0x8] sm:$0xff]
        %v164 = vld [vmem:[%s156 + $0x10] sm:$0x3f]
        %v165 = vld [vmem:[%s161] sm:$0xff]
        %v166 = vld [vmem:[%s161 + $0x8] sm:$0xff]
        %v167 = vld [vmem:[%s161 + $0x10] sm:$0x3f]
        %vm171 = vcmask 1046528
        %v172 = vrot.slane %v162, 1
        %v173 = vrot.slane %v163, 1
        %v174 = vsel %vm171, %v172, %v173
        %v175 = vrot.slane %v164, 1
        %v176 = vsel %vm171, %v173, %v175
        %v180 = vadd.f32 %v162, %v174
        %v181 = vadd.f32 %v163, %v176
        %v182 = vadd.f32 %v164, %v175
        %vm186 = vcmask 1045504
        %v187 = vrot.slane %v180, 2
        %v188 = vrot.slane %v181, 2
        %v189 = vsel %vm186, %v187, %v188
        %v190 = vrot.slane %v182, 2
        %v191 = vsel %vm186, %v188, %v190
        %v194 = vadd.f32 %v180, %v189
        %v195 = vadd.f32 %v181, %v191
        %vm196 = vcmask 1043456
        %v197 = vrot.slane %v180, 4
        %v198 = vrot.slane %v181, 4
        %v199 = vsel %vm196, %v197, %v198
        %v200 = vrot.slane %v182, 4
        %v201 = vsel %vm196, %v198, %v200
        %v204 = vadd.f32 %v194, %v199
        %v205 = vadd.f32 %v195, %v201
        %vm206 = vcmask 1041408
        %v207 = vrot.slane %v162, 6
        %v208 = vrot.slane %v163, 6
        %v209 = vsel %vm206, %v207, %v208
        %v210 = vrot.slane %v164, 6
        %v211 = vsel %vm206, %v208, %v210
        %v214 = vadd.f32 %v204, %v209
        %v215 = vadd.f32 %v205, %v211
        %218 = vrot.lane.b32.xlu0 %v214, 127
        %v219 = vpop.permute.xlu0 %218
        %220 = vrot.lane.b32.xlu0 %v215, 127
        %v221 = vpop.permute.xlu0 %220
        %v224 = vadd.f32 %v214, %v219
        %v225 = vadd.f32 %v215, %v221
        %228 = vrot.lane.b32.xlu0 %v224, 126
        %v229 = vpop.permute.xlu0 %228
        %230 = vrot.lane.b32.xlu0 %v225, 126
        %v231 = vpop.permute.xlu0 %230
        %v234 = vadd.f32 %v224, %v229
        %v235 = vadd.f32 %v225, %v231
        %236 = vrot.lane.b32.xlu0 %v224, 124
        %v237 = vpop.permute.xlu0 %236
        %238 = vrot.lane.b32.xlu0 %v225, 124
        %v239 = vpop.permute.xlu0 %238
        %v242 = vadd.f32 %v234, %v237
        %v243 = vadd.f32 %v235, %v239
        %244 = vrot.lane.b32.xlu0 %v214, 122
        %v245 = vpop.permute.xlu0 %244
        %246 = vrot.lane.b32.xlu0 %v215, 122
        %v247 = vpop.permute.xlu0 %246
        %v250 = vadd.f32 %v242, %v245
        %v251 = vadd.f32 %v243, %v247
        %v255 = vrot.slane %v165, 1
        %v256 = vrot.slane %v166, 1
        %v257 = vsel %vm171, %v255, %v256
        %v258 = vrot.slane %v167, 1
        %v259 = vsel %vm171, %v256, %v258
        %v263 = vadd.f32 %v165, %v257
        %v264 = vadd.f32 %v166, %v259
        %v265 = vadd.f32 %v167, %v258
        %v269 = vrot.slane %v263, 2
        %v270 = vrot.slane %v264, 2
        %v271 = vsel %vm186, %v269, %v270
        %v272 = vrot.slane %v265, 2
        %v273 = vsel %vm186, %v270, %v272
        %v276 = vadd.f32 %v263, %v271
        %v277 = vadd.f32 %v264, %v273
        %v278 = vrot.slane %v263, 4
        %v279 = vrot.slane %v264, 4
        %v280 = vsel %vm196, %v278, %v279
        %v281 = vrot.slane %v265, 4
        %v282 = vsel %vm196, %v279, %v281
        %v285 = vadd.f32 %v276, %v280
        %v286 = vadd.f32 %v277, %v282
        %v287 = vrot.slane %v165, 6
        %v288 = vrot.slane %v166, 6
        %v289 = vsel %vm206, %v287, %v288
        %v290 = vrot.slane %v167, 6
        %v291 = vsel %vm206, %v288, %v290
        %v294 = vadd.f32 %v285, %v289
        %v295 = vadd.f32 %v286, %v291
        %298 = vrot.lane.b32.xlu0 %v294, 127
        %v299 = vpop.permute.xlu0 %298
        %300 = vrot.lane.b32.xlu0 %v295, 127
        %v301 = vpop.permute.xlu0 %300
        %v304 = vadd.f32 %v294, %v299
        %v305 = vadd.f32 %v295, %v301
        %308 = vrot.lane.b32.xlu0 %v304, 126
        %v309 = vpop.permute.xlu0 %308
        %310 = vrot.lane.b32.xlu0 %v305, 126
        %v311 = vpop.permute.xlu0 %310
        %v314 = vadd.f32 %v304, %v309
        %v315 = vadd.f32 %v305, %v311
        %316 = vrot.lane.b32.xlu0 %v304, 124
        %v317 = vpop.permute.xlu0 %316
        %318 = vrot.lane.b32.xlu0 %v305, 124
        %v319 = vpop.permute.xlu0 %318
        %v322 = vadd.f32 %v314, %v317
        %v323 = vadd.f32 %v315, %v319
        %324 = vrot.lane.b32.xlu0 %v294, 122
        %v325 = vpop.permute.xlu0 %324
        %326 = vrot.lane.b32.xlu0 %v295, 122
        %v327 = vpop.permute.xlu0 %326
        %v330 = vadd.f32 %v322, %v325
        %v331 = vadd.f32 %v323, %v327
        %v332 = vmul.f32 %v162, %v162
        %v333 = vmul.f32 %v163, %v163
        %v334 = vmul.f32 %v164, %v164
        %v338 = vrot.slane %v332, 1
        %v339 = vrot.slane %v333, 1
        %v340 = vsel %vm171, %v338, %v339
        %v341 = vrot.slane %v334, 1
        %v342 = vsel %vm171, %v339, %v341
        %v346 = vadd.f32 %v332, %v340
        %v347 = vadd.f32 %v333, %v342
        %v348 = vadd.f32 %v334, %v341
        %v352 = vrot.slane %v346, 2
        %v353 = vrot.slane %v347, 2
        %v354 = vsel %vm186, %v352, %v353
        %v355 = vrot.slane %v348, 2
        %v356 = vsel %vm186, %v353, %v355
        %v359 = vadd.f32 %v346, %v354
        %v360 = vadd.f32 %v347, %v356
        %v361 = vrot.slane %v346, 4
        %v362 = vrot.slane %v347, 4
        %v363 = vsel %vm196, %v361, %v362
        %v364 = vrot.slane %v348, 4
        %v365 = vsel %vm196, %v362, %v364
        %v368 = vadd.f32 %v359, %v363
        %v369 = vadd.f32 %v360, %v365
        %v370 = vrot.slane %v332, 6
        %v371 = vrot.slane %v333, 6
        %v372 = vsel %vm206, %v370, %v371
        %v373 = vrot.slane %v334, 6
        %v374 = vsel %vm206, %v371, %v373
        %v377 = vadd.f32 %v368, %v372
        %v378 = vadd.f32 %v369, %v374
        %381 = vrot.lane.b32.xlu0 %v377, 127
        %v382 = vpop.permute.xlu0 %381
        %383 = vrot.lane.b32.xlu0 %v378, 127
        %v384 = vpop.permute.xlu0 %383
        %v387 = vadd.f32 %v377, %v382
        %v388 = vadd.f32 %v378, %v384
        %391 = vrot.lane.b32.xlu0 %v387, 126
        %v392 = vpop.permute.xlu0 %391
        %393 = vrot.lane.b32.xlu0 %v388, 126
        %v394 = vpop.permute.xlu0 %393
        %v397 = vadd.f32 %v387, %v392
        %v398 = vadd.f32 %v388, %v394
        %399 = vrot.lane.b32.xlu0 %v387, 124
        %v400 = vpop.permute.xlu0 %399
        %401 = vrot.lane.b32.xlu0 %v388, 124
        %v402 = vpop.permute.xlu0 %401
        %v405 = vadd.f32 %v397, %v400
        %v406 = vadd.f32 %v398, %v402
        %407 = vrot.lane.b32.xlu0 %v377, 122
        %v408 = vpop.permute.xlu0 %407
        %409 = vrot.lane.b32.xlu0 %v378, 122
        %v410 = vpop.permute.xlu0 %409
        %v413 = vadd.f32 %v405, %v408
        %v414 = vadd.f32 %v406, %v410
        %v415 = vmul.f32 %v165, %v165
        %v416 = vmul.f32 %v166, %v166
        %v417 = vmul.f32 %v167, %v167
        %v421 = vrot.slane %v415, 1
        %v422 = vrot.slane %v416, 1
        %v423 = vsel %vm171, %v421, %v422
        %v424 = vrot.slane %v417, 1
        %v425 = vsel %vm171, %v422, %v424
        %v429 = vadd.f32 %v415, %v423
        %v430 = vadd.f32 %v416, %v425
        %v431 = vadd.f32 %v417, %v424
        %v435 = vrot.slane %v429, 2
        %v436 = vrot.slane %v430, 2
        %v437 = vsel %vm186, %v435, %v436
        %v438 = vrot.slane %v431, 2
        %v439 = vsel %vm186, %v436, %v438
        %v442 = vadd.f32 %v429, %v437
        %v443 = vadd.f32 %v430, %v439
        %v444 = vrot.slane %v429, 4
        %v445 = vrot.slane %v430, 4
        %v446 = vsel %vm196, %v444, %v445
        %v447 = vrot.slane %v431, 4
        %v448 = vsel %vm196, %v445, %v447
        %v451 = vadd.f32 %v442, %v446
        %v452 = vadd.f32 %v443, %v448
        %v453 = vrot.slane %v415, 6
        %v454 = vrot.slane %v416, 6
        %v455 = vsel %vm206, %v453, %v454
        %v456 = vrot.slane %v417, 6
        %v457 = vsel %vm206, %v454, %v456
        %v460 = vadd.f32 %v451, %v455
        %v461 = vadd.f32 %v452, %v457
        %464 = vrot.lane.b32.xlu0 %v460, 127
        %v465 = vpop.permute.xlu0 %464
        %466 = vrot.lane.b32.xlu0 %v461, 127
        %v467 = vpop.permute.xlu0 %466
        %v470 = vadd.f32 %v460, %v465
        %v471 = vadd.f32 %v461, %v467
        %474 = vrot.lane.b32.xlu0 %v470, 126
        %v475 = vpop.permute.xlu0 %474
        %476 = vrot.lane.b32.xlu0 %v471, 126
        %v477 = vpop.permute.xlu0 %476
        %v480 = vadd.f32 %v470, %v475
        %v481 = vadd.f32 %v471, %v477
        %482 = vrot.lane.b32.xlu0 %v470, 124
        %v483 = vpop.permute.xlu0 %482
        %484 = vrot.lane.b32.xlu0 %v471, 124
        %v485 = vpop.permute.xlu0 %484
        %v488 = vadd.f32 %v480, %v483
        %v489 = vadd.f32 %v481, %v485
        %490 = vrot.lane.b32.xlu0 %v460, 122
        %v491 = vpop.permute.xlu0 %490
        %492 = vrot.lane.b32.xlu0 %v461, 122
        %v493 = vpop.permute.xlu0 %492
        %v496 = vadd.f32 %v488, %v491
        %v497 = vadd.f32 %v489, %v493
        %v498 = vmul.f32 %v162, %v165
        %v499 = vmul.f32 %v163, %v166
        %v500 = vmul.f32 %v164, %v167
        %v504 = vrot.slane %v498, 1
        %v505 = vrot.slane %v499, 1
        %v506 = vsel %vm171, %v504, %v505
        %v507 = vrot.slane %v500, 1
        %v508 = vsel %vm171, %v505, %v507
        %v512 = vadd.f32 %v498, %v506
        %v513 = vadd.f32 %v499, %v508
        %v514 = vadd.f32 %v500, %v507
        %v518 = vrot.slane %v512, 2
        %v519 = vrot.slane %v513, 2
        %v520 = vsel %vm186, %v518, %v519
        %v521 = vrot.slane %v514, 2
        %v522 = vsel %vm186, %v519, %v521
        %v525 = vadd.f32 %v512, %v520
        %v526 = vadd.f32 %v513, %v522
        %v527 = vrot.slane %v512, 4
        %v528 = vrot.slane %v513, 4
        %v529 = vsel %vm196, %v527, %v528
        %v530 = vrot.slane %v514, 4
        %v531 = vsel %vm196, %v528, %v530
        %v534 = vadd.f32 %v525, %v529
        %v535 = vadd.f32 %v526, %v531
        %v536 = vrot.slane %v498, 6
        %v537 = vrot.slane %v499, 6
        %v538 = vsel %vm206, %v536, %v537
        %v539 = vrot.slane %v500, 6
        %v540 = vsel %vm206, %v537, %v539
        %v543 = vadd.f32 %v534, %v538
        %v544 = vadd.f32 %v535, %v540
        %547 = vrot.lane.b32.xlu0 %v543, 127
        %v548 = vpop.permute.xlu0 %547
        %549 = vrot.lane.b32.xlu0 %v544, 127
        %v550 = vpop.permute.xlu0 %549
        %v553 = vadd.f32 %v543, %v548
        %v554 = vadd.f32 %v544, %v550
        %557 = vrot.lane.b32.xlu0 %v553, 126
        %v558 = vpop.permute.xlu0 %557
        %559 = vrot.lane.b32.xlu0 %v554, 126
        %v560 = vpop.permute.xlu0 %559
        %v563 = vadd.f32 %v553, %v558
        %v564 = vadd.f32 %v554, %v560
        %565 = vrot.lane.b32.xlu0 %v553, 124
        %v566 = vpop.permute.xlu0 %565
        %567 = vrot.lane.b32.xlu0 %v554, 124
        %v568 = vpop.permute.xlu0 %567
        %v571 = vadd.f32 %v563, %v566
        %v572 = vadd.f32 %v564, %v568
        %573 = vrot.lane.b32.xlu0 %v543, 122
        %v574 = vpop.permute.xlu0 %573
        %575 = vrot.lane.b32.xlu0 %v544, 122
        %v576 = vpop.permute.xlu0 %575
        %v579 = vadd.f32 %v571, %v574
        %v580 = vadd.f32 %v572, %v576
        %v581 = vmul.f32 %v250, %v330
        %v582 = vmul.f32 %v251, %v331
        %v583 = vmul.f32 %v250, %v250
        %v584 = vmul.f32 %v251, %v251
        %v585 = vmul.f32 %v330, %v330
        %v586 = vmul.f32 %v331, %v331
        %v587 = vadd.f32 %v583, %v585
        %v588 = vadd.f32 %v584, %v586
        %v589 = vmul.f32 %v581, 2.0
        %v590 = vmul.f32 %v582, 2.0
        %v591 = vadd.f32 %v589, 0.2401
        %v592 = vadd.f32 %v590, 0.2401
        %v593 = vmul.f32 %v579, 49.0
        %v594 = vmul.f32 %v580, 49.0
        %v595 = vsub.f32 %v593, %v581
        %v596 = vsub.f32 %v594, %v582
        %v597 = vmul.f32 %v595, 2.0
        %v598 = vmul.f32 %v596, 2.0
        %v599 = vadd.f32 %v597, 2.1609
        %v600 = vadd.f32 %v598, 2.1609
        %v601 = vmul.f32 %v591, %v599
        %v602 = vmul.f32 %v592, %v600
        %v603 = vadd.f32 %v587, 0.2401
        %v604 = vadd.f32 %v588, 0.2401
        %v605 = vadd.f32 %v413, %v496
        %v606 = vadd.f32 %v414, %v497
        %v607 = vmul.f32 %v605, 49.0
        %v608 = vmul.f32 %v606, 49.0
        %v609 = vsub.f32 %v607, %v587
        %v610 = vsub.f32 %v608, %v588
        %v611 = vadd.f32 %v609, 2.1609
        %v612 = vadd.f32 %v610, 2.1609
        %v613 = vmul.f32 %v603, %v611
        %v614 = vmul.f32 %v604, %v612
        %v615 = vrcp.pop %v613
        %v616 = vrcp.pop %v614
        %v617 = vmul.f32 %v613, %v615
        %v618 = vmul.f32 %v614, %v616
        %v619 = vsub.f32 2.0, %v617
        %v620 = vsub.f32 2.0, %v618
        %v621 = vmul.f32 %v615, %v619
        %v622 = vmul.f32 %v616, %v620
        %v623 = vmul.f32 %v601, %v621
        %v624 = vmul.f32 %v602, %v622
        %v625 = vsub.f32 1.0, %v623
        %v626 = vsub.f32 1.0, %v624
        %v627 = vmul.f32 %v625, 0.5
        %v628 = vmul.f32 %v626, 0.5
        %v629 = vmax.f32 %v627, 0.0
        %v630 = vmax.f32 %v628, 0.0
        %v631 = vmin.f32 %v629, 1.0
        %v632 = vmin.f32 %v630, 1.0
        %vm633 = vcmask 130048
        %634 = vst.msk [vmem:[%s151] sm:$0xff] %vm633, %v631
        %635 = vst.msk [vmem:[%s151 + $0x8] sm:$0xff] %vm633, %v632
        %s636 = sand.u32 %s76, 1
        %s637 = scalar_lea.sflag [#allocation3], %s636
        %s638 = sand.u32 %s76, 1
        %s639 = smul.addr %s638, 16
        %s640 = scalar_lea.vmem [#allocation2], %s639
        // Predicated region
        $region29: #{tpu_custom_call.1} parent=27 // pred_check
          %p641 = pneg %p86
        $region30: #{tpu_custom_call.1} parent=27 // pred_check_branch
          %643 = sbr.rel (%p641) target = $region32
        $region31: #{tpu_custom_call.1} parent=27 // pred_region
          %s645 = ssub.s32 256, 256
          %646 = vsyncadd %s637, %s645
          %s647 = smul.addr %s16, 2
          %s648 = smul.addr %s647, 128
          %s649 = scalar_lea.hbm %s2, %s648
          %s650 = sshll.u32 %s640, 4
          %s651 = int_to_ptr.vmem [resolvable:$true] %s650
          %656 = dma.vmem_to_hbm [thread:$0]  %s651, 256, %s649, %s637, 128, 128, 8
        $region32: #{tpu_custom_call.1} parent=27 // pred_fallthru
          _
      $region28: #{tpu_custom_call.1} parent=5 // pred_fallthru
        _
      %p657 = scmp.le.s32.totalorder 2, %s11
      // Predicated region
      $region33: #{tpu_custom_call.1} parent=5 // pred_check
        %p658 = pneg %p657
      $region34: #{tpu_custom_call.1} parent=5 // pred_check_branch
        %660 = sbr.rel (%p658) target = $region36
      $region35: #{tpu_custom_call.1} parent=5 // pred_region
        %s661 = ssub.s32 %s11, 2
        // Predicated region
        $region37: #{tpu_custom_call.1} parent=35 // pred_check
          %p662 = pneg %p92
        $region38: #{tpu_custom_call.1} parent=35 // pred_check_branch
          %664 = sbr.rel (%p662) target = $region40
        $region39: #{tpu_custom_call.1} parent=35 // pred_region
          %s665 = sand.u32 %s77, 1
          %s666 = scalar_lea.sflag [#allocation3], %s665
          %s667 = sand.u32 %s77, 1
          %s668 = smul.addr %s667, 16
          %s669 = scalar_lea.vmem [#allocation2], %s668
          %670 = dma.done %s666, 256
        $region40: #{tpu_custom_call.1} parent=35 // pred_fallthru
          _
      $region36: #{tpu_custom_call.1} parent=5 // pred_fallthru
        _
    $region6: #{tpu_custom_call.1} parent=1 // loop_footer
      %s15 = sadd.s32 1, %s11
    $region7: #{tpu_custom_call.1} parent=1 // loop_footer_branch
      %10 = sbr.rel target = $region3
    $region8: #{tpu_custom_call.1} parent=1 // loop_exit
      _
    %671 = vsyncpa [#allocation3], 1
    %s672 = scalar_lea.sflag [#allocation3], 1
    %673 = vsyncpa %s672, 1

</llo_original>
